<compile_context>
chip_gen: v7x
topology: tpu7x:2x2x1
jax: 0.10.0
libtpu: 0.0.40
codegen_flags: <defaults>
</compile_context>

<pallas_src>
import functools

import jax
import jax.numpy as jnp
from jax.experimental import pallas as pl
from jax.experimental.pallas import tpu as pltpu


def _round_up(x, m):
    return (x + m - 1) // m * m


def _oim_fwd_kernel(feat_ref, lut_t_ref,              # inputs
                    logits_ref, lse_ref,              # outputs
                    fs_ref, m_ref, l_ref,             # VMEM scratch
                    *, scalar, num_classes, class_tile, mask_padding):
    c = pl.program_id(1)

    @pl.when(c == 0)
    def _init():
        # Scale the features ONCE per batch tile: f32 multiply, then cast to
        # the matmul/compute dtype (e.g. bf16).  Avoids repeating the [TB, F]
        # VPU pass on every class tile and avoids double bf16 rounding.
        fs_ref[...] = (feat_ref[...].astype(jnp.float32)
                       * jnp.float32(scalar)).astype(fs_ref.dtype)
        m_ref[...] = jnp.full(m_ref.shape, -jnp.inf, jnp.float32)
        l_ref[...] = jnp.zeros(l_ref.shape, jnp.float32)

    # MXU matmul against the [Fp, TC] lut^T tile (no per-tile transpose),
    # f32 accumulation.
    s = jnp.dot(fs_ref[...], lut_t_ref[...],
                preferred_element_type=jnp.float32)            # [TB, TC]

    # Scaled logits tile ("inputs" in the PyTorch module), lane-dense store.
    logits_ref[...] = s.astype(logits_ref.dtype)

    # --- online logsumexp (f32) ---
    m_prev = m_ref[...]
    if mask_padding:
        # Only compiled in when C is not a multiple of the class tile: the
        # padded columns must be excluded from the logsumexp.  (Only the last
        # class tile actually contains padding; it always holds >= 1 valid
        # class because Cp - C < 128 <= TC, so m_new stays finite.)
        col = jax.lax.broadcasted_iota(jnp.int32, s.shape, 1) + c * class_tile
        valid = col < num_classes
        tile_max = jnp.max(jnp.where(valid, s, -jnp.inf), axis=-1,
                           keepdims=True)
        m_new = jnp.maximum(m_prev, tile_max)
        p_sum = jnp.sum(jnp.where(valid, jnp.exp(s - m_new), 0.0),
                        axis=-1, keepdims=True)
    else:
        tile_max = jnp.max(s, axis=-1, keepdims=True)
        m_new = jnp.maximum(m_prev, tile_max)
        p_sum = jnp.sum(jnp.exp(s - m_new), axis=-1, keepdims=True)

    l_ref[...] = jnp.exp(m_prev - m_new) * l_ref[...] + p_sum
    m_ref[...] = m_new

    @pl.when(c == pl.num_programs(1) - 1)
    def _finalize():
        lse = m_ref[...] + jnp.log(l_ref[...])                 # [TB, 1]
        # Broadcast across 128 lanes -> unmasked full-vreg store.
        lse_ref[...] = jnp.broadcast_to(lse, lse_ref.shape)


def prepare_oim_lut(lut, *, compute_dtype=None, class_align=128,
                    feature_align=128):
    """Transpose / pad / (optionally) cast the [C, F] OIM table ONCE.

    Persist the returned [Fp, Cp] array in the training state (and apply the
    OIM momentum updates to it directly) so the per-step forward never pays a
    full-table transpose + pad in HBM.  Pass compute_dtype=jnp.bfloat16 to
    halve the streamed lut bytes and double MXU throughput on v6e/v7x.
    """
    C, F = lut.shape
    dt = jnp.dtype(compute_dtype) if compute_dtype is not None else jnp.dtype(
        lut.dtype)
    Cp = _round_up(C, class_align)
    Fp = _round_up(F, feature_align)
    return jnp.zeros((Fp, Cp), dt).at[:F, :C].set(lut.T.astype(dt))


def oim_loss_forward(features, targets, lut_t, num_classes, scalar=1.0, *,
                     class_tile=1024, batch_tile=256, out_dtype=None,
                     lut_buffer_count=2, vmem_limit_bytes=None):
    """Pallas forward of OIMLoss: returns (loss, scaled_logits[B, C]).

    features: [B, F]   any float dtype (scaled + cast to lut_t.dtype in-kernel)
    targets:  [B]      int class ids in [0, num_classes)  (assumed in range)
    lut_t:    [Fp, Cp] pre-transposed / pre-padded table from prepare_oim_lut
    """
    B, F = features.shape
    Fp, Cp = lut_t.shape
    assert F <= Fp and num_classes <= Cp
    compute_dtype = jnp.dtype(lut_t.dtype)
    out_dtype = jnp.dtype(out_dtype) if out_dtype is not None else jnp.dtype(
        features.dtype)

    # --- tile selection -----------------------------------------------------
    TB = min(batch_tile, _round_up(B, 8))
    Bp = _round_up(B, TB)
    # TODO(synk): on v7x, if Bp // TB == 1 and the kernel is compute-bound
    # (bf16, large F), split TB in two so both TensorCores get a "parallel"
    # grid step; when lut-HBM-bound keep one tile (splitting re-streams the lut).

    # Largest class tile <= class_tile that is a multiple of 128 and divides Cp.
    TC = max(128, min(_round_up(class_tile, 128), Cp))
    while Cp % TC != 0:
        TC -= 128

    # Generation-aware VMEM budget (64 MiB physical on v7x, 128 MiB v5e/v6e).
    if vmem_limit_bytes is None:
        try:
            phys = pltpu.get_tpu_info().vmem_capacity_bytes
        except Exception:  # API unavailable / not a TPU backend
            phys = 64 * 1024 * 1024
        vmem_limit_bytes = min(100 * 1024 * 1024, int(phys * 0.72))

    csize = compute_dtype.itemsize
    fsize = jnp.dtype(features.dtype).itemsize
    osize = out_dtype.itemsize
    nbuf = max(2, int(lut_buffer_count))

    def _vmem_bytes(tc):
        return (2 * TB * Fp * fsize          # double-buffered feature tile
                + TB * Fp * csize            # scaled-feature scratch
                + nbuf * Fp * tc * csize     # pipelined lut^T tiles
                + 2 * TB * tc * osize        # double-buffered logits tile
                + 2 * TB * 128 * 4           # lse output tile
                + 2 * TB * 4 * 2)            # m / l scratch

    while TC > 128 and _vmem_bytes(TC) > int(0.85 * vmem_limit_bytes):
        tc = max(128, (TC // 2 // 128) * 128)
        while Cp % tc != 0:
            tc -= 128
        if tc == TC:
            break
        TC = tc

    # --- pad the small per-step tensors (features only; lut is pre-padded) --
    feat_p = features
    if (B, F) != (Bp, Fp):
        feat_p = jnp.zeros((Bp, Fp), features.dtype).at[:B, :F].set(features)

    mask_padding = bool(Cp != num_classes)

    kernel = functools.partial(
        _oim_fwd_kernel, scalar=float(scalar), num_classes=num_classes,
        class_tile=TC, mask_padding=mask_padding)

    lut_spec_kwargs = {}
    if nbuf != 2:
        # v7x sweep: a 3rd buffer hides DMA issue latency once compute-bound.
        lut_spec_kwargs["pipeline_mode"] = pl.Buffered(nbuf)
    lut_spec = pl.BlockSpec((Fp, TC), lambda b, c: (0, c), **lut_spec_kwargs)

    logits_p, lse_rows = pl.pallas_call(
        kernel,
        out_shape=(
            jax.ShapeDtypeStruct((Bp, Cp), out_dtype),       # scaled logits
            jax.ShapeDtypeStruct((Bp, 128), jnp.float32),    # per-row logsumexp
        ),
        grid_spec=pltpu.PrefetchScalarGridSpec(
            num_scalar_prefetch=0,
            grid=(Bp // TB, Cp // TC),
            in_specs=[
                pl.BlockSpec((TB, Fp), lambda b, c: (b, 0)),   # features
                lut_spec,                                      # lut^T tile
            ],
            out_specs=[
                pl.BlockSpec((TB, TC), lambda b, c: (b, c)),   # logits
                pl.BlockSpec((TB, 128), lambda b, c: (b, 0)),  # per-row lse
            ],
            scratch_shapes=[
                pltpu.VMEM((TB, Fp), compute_dtype),   # scaled features
                pltpu.VMEM((TB, 1), jnp.float32),      # running max m
                pltpu.VMEM((TB, 1), jnp.float32),      # running sum l
            ],
        ),
        compiler_params=pltpu.CompilerParams(
            dimension_semantics=("parallel", "arbitrary"),
            vmem_limit_bytes=int(vmem_limit_bytes),
        ),
    )(feat_p, lut_t)

    logits = logits_p[:B, :num_classes]
    lse = lse_rows[:B, 0]
    # Target-logit gather happens here (tiny [B]-sized gather on the logits
    # output) instead of paying a [TB, TC] compare + select + cross-lane
    # reduction on every class tile inside the kernel.
    # TODO(synk): out-of-range targets silently clamp here instead of raising
    # like torch.nn.functional.cross_entropy.
    tgt_logit = jnp.take_along_axis(
        logits.astype(jnp.float32), targets.astype(jnp.int32)[:, None],
        axis=1)[:, 0]
    loss = jnp.mean(lse - tgt_logit)       # weight=None, size_average=True
    return loss, logits


if __name__ == "__main__":
    key = jax.random.PRNGKey(0)
    k1, k2, k3, k4, k5 = jax.random.split(key, 5)
    SCALAR = 30.0

    # --- case 1: module-like small shapes, f32 lut, padded-class (mask) path -
    B, NUM_FEATURES, NUM_CLASSES = 8, 32, 16
    features = jax.random.normal(k1, (B, NUM_FEATURES), jnp.float32)
    features = features / jnp.linalg.norm(features, axis=-1, keepdims=True)
    targets = jax.random.randint(k2, (B,), 0, NUM_CLASSES, jnp.int32)
    lut = jax.random.normal(k3, (NUM_CLASSES, NUM_FEATURES), jnp.float32)
    lut = lut / jnp.linalg.norm(lut, axis=-1, keepdims=True)

    lut_t = prepare_oim_lut(lut)          # persist this in the training state
    loss, logits = oim_loss_forward(features, targets, lut_t, NUM_CLASSES,
                                    scalar=SCALAR)
    jax.block_until_ready((loss, logits))

    ref_logits = (features @ lut.T) * SCALAR
    ref_lse = jax.scipy.special.logsumexp(ref_logits, axis=-1)
    ref_loss = jnp.mean(ref_lse - ref_logits[jnp.arange(B), targets])
    assert jnp.allclose(logits, ref_logits, atol=1e-3, rtol=1e-4), (
        float(jnp.max(jnp.abs(logits - ref_logits))))
    assert jnp.allclose(loss, ref_loss, atol=1e-3, rtol=1e-4), (
        float(loss), float(ref_loss))

    # --- case 2: bf16 lut (bandwidth mode), C multiple of 128 (no-mask path),
    #             multiple class tiles to exercise the online logsumexp. ------
    B2, F2, C2 = 16, 64, 256
    feats2 = jax.random.normal(k4, (B2, F2), jnp.float32)
    feats2 = feats2 / jnp.linalg.norm(feats2, axis=-1, keepdims=True)
    tgts2 = jax.random.randint(k5, (B2,), 0, C2, jnp.int32)
    lut2 = jax.random.normal(jax.random.PRNGKey(1), (C2, F2), jnp.float32)
    lut2 = lut2 / jnp.linalg.norm(lut2, axis=-1, keepdims=True)

    lut2_t = prepare_oim_lut(lut2, compute_dtype=jnp.bfloat16)
    loss2, logits2 = oim_loss_forward(feats2, tgts2, lut2_t, C2, scalar=SCALAR,
                                      class_tile=128)
    jax.block_until_ready((loss2, logits2))

    ref_logits2 = (feats2 @ lut2.T) * SCALAR
    ref_lse2 = jax.scipy.special.logsumexp(ref_logits2, axis=-1)
    ref_loss2 = jnp.mean(ref_lse2 - ref_logits2[jnp.arange(B2), tgts2])
    assert jnp.allclose(logits2, ref_logits2, atol=0.35, rtol=2e-2), (
        float(jnp.max(jnp.abs(logits2 - ref_logits2))))
    assert jnp.allclose(loss2, ref_loss2, atol=0.35, rtol=2e-2), (
        float(loss2), float(ref_loss2))

    print("KERNEL_OK")
</pallas_src>

<mosaic_0001>
module attributes {stable_mosaic.version = 11 : i64} {
  func.func @_oim_fwd_kernel(%arg0: i32, %arg1: i32, %arg2: memref<8x128xf32, #tpu.memory_space<vmem>>, %arg3: memref<128x128xf32, #tpu.memory_space<vmem>>, %arg4: memref<8x128xf32, #tpu.memory_space<vmem>>, %arg5: memref<8x128xf32, #tpu.memory_space<vmem>>, %arg6: memref<8x128xf32, #tpu.memory_space<vmem>>, %arg7: memref<8x1xf32, #tpu.memory_space<vmem>>, %arg8: memref<8x1xf32, #tpu.memory_space<vmem>>) attributes {dimension_semantics = [#tpu.dimension_semantics<parallel>, #tpu.dimension_semantics<arbitrary>], iteration_bounds = array<i64: 1, 1>, scalar_prefetch = 0 : i64, scratch_operands = 3 : i64, tpu.core_type = #tpu.core_type<tc>, window_params = [{transform_indices = @transform_0, window_bounds = array<i64: 8, 128>}, {transform_indices = @transform_1, window_bounds = array<i64: 128, 128>}, {transform_indices = @transform_2, window_bounds = array<i64: 8, 128>}, {transform_indices = @transform_3, window_bounds = array<i64: 8, 128>}]} {
    %c0_i32 = arith.constant 0 : i32
    %0 = arith.cmpi eq, %arg1, %c0_i32 : i32
    %1 = arith.extui %0 : i1 to i32
    %c0_i32_0 = arith.constant 0 : i32
    %2 = arith.cmpi ne, %1, %c0_i32_0 : i32
    scf.if %2 {
      %c0_20 = arith.constant 0 : index
      %c0_21 = arith.constant 0 : index
      %36 = vector.load %arg2[%c0_20, %c0_21] : memref<8x128xf32, #tpu.memory_space<vmem>>, vector<8x128xf32>
      %cst_22 = arith.constant 3.000000e+01 : f32
      %37 = vector.broadcast %cst_22 : f32 to vector<8x128xf32>
      %38 = arith.mulf %36, %37 : vector<8x128xf32>
      %c0_23 = arith.constant 0 : index
      %c0_24 = arith.constant 0 : index
      %39 = vector.load %arg6[%c0_23, %c0_24] : memref<8x128xf32, #tpu.memory_space<vmem>>, vector<8x128xf32>
      tpu.vector_store %arg6[%c0_23, %c0_24], %38 {strides = array<i32>} : memref<8x128xf32, #tpu.memory_space<vmem>>, vector<8x128xf32>,
      %cst_25 = arith.constant 0xFF800000 : f32
      %40 = vector.broadcast %cst_25 : f32 to vector<8x1xf32>
      %c0_26 = arith.constant 0 : index
      %c0_27 = arith.constant 0 : index
      %41 = vector.load %arg7[%c0_26, %c0_27] : memref<8x1xf32, #tpu.memory_space<vmem>>, vector<8x1xf32>
      tpu.vector_store %arg7[%c0_26, %c0_27], %40 {strides = array<i32>} : memref<8x1xf32, #tpu.memory_space<vmem>>, vector<8x1xf32>,
      %cst_28 = arith.constant 0.000000e+00 : f32
      %42 = vector.broadcast %cst_28 : f32 to vector<8x1xf32>
      %c0_29 = arith.constant 0 : index
      %c0_30 = arith.constant 0 : index
      %43 = vector.load %arg8[%c0_29, %c0_30] : memref<8x1xf32, #tpu.memory_space<vmem>>, vector<8x1xf32>
      tpu.vector_store %arg8[%c0_29, %c0_30], %42 {strides = array<i32>} : memref<8x1xf32, #tpu.memory_space<vmem>>, vector<8x1xf32>,
    } else {
    }
    %c0 = arith.constant 0 : index
    %c0_1 = arith.constant 0 : index
    %3 = vector.load %arg6[%c0, %c0_1] : memref<8x128xf32, #tpu.memory_space<vmem>>, vector<8x128xf32>
    %c0_2 = arith.constant 0 : index
    %c0_3 = arith.constant 0 : index
    %4 = vector.load %arg3[%c0_2, %c0_3] : memref<128x128xf32, #tpu.memory_space<vmem>>, vector<128x128xf32>
    %cst = arith.constant dense<0.000000e+00> : vector<8x128xf32>
    %5 = tpu.matmul %3, %4, %cst {dimension_numbers = #tpu.dot_dimension_numbers<[1], [0], [0], [1], [0, 0, 1, 1], [], []>} : vector<8x128xf32>, vector<128x128xf32>, vector<8x128xf32> -> vector<8x128xf32>
    %c0_4 = arith.constant 0 : index
    %c0_5 = arith.constant 0 : index
    %6 = vector.load %arg4[%c0_4, %c0_5] : memref<8x128xf32, #tpu.memory_space<vmem>>, vector<8x128xf32>
    tpu.vector_store %arg4[%c0_4, %c0_5], %5 {strides = array<i32>} : memref<8x128xf32, #tpu.memory_space<vmem>>, vector<8x128xf32>,
    %c0_6 = arith.constant 0 : index
    %c0_7 = arith.constant 0 : index
    %7 = vector.load %arg7[%c0_6, %c0_7] : memref<8x1xf32, #tpu.memory_space<vmem>>, vector<8x1xf32>
    %8 = tpu.iota {dimensions = array<i32: 1>} : vector<8x128xi32>
    %c128_i32 = arith.constant 128 : i32
    %9 = arith.muli %arg1, %c128_i32 : i32
    %10 = vector.broadcast %9 : i32 to vector<8x128xi32>
    %11 = arith.addi %8, %10 : vector<8x128xi32>
    %c16_i32 = arith.constant 16 : i32
    %12 = vector.broadcast %c16_i32 : i32 to vector<8x128xi32>
    %13 = arith.cmpi slt, %11, %12 : vector<8x128xi32>
    %cst_8 = arith.constant 0xFF800000 : f32
    %14 = vector.broadcast %cst_8 : f32 to vector<8x128xf32>
    %15 = arith.select %13, %5, %14 : vector<8x128xi1>, vector<8x128xf32>
    %cst_9 = arith.constant dense<0xFF800000> : vector<8xf32>
    %16 = vector.multi_reduction <maximumf>, %15, %cst_9 [1] : vector<8x128xf32> to vector<8xf32>
    %17 = vector.shape_cast %16 : vector<8xf32> to vector<8x1xf32>
    %18 = arith.maximumf %7, %17 : vector<8x1xf32>
    %19 = vector.broadcast %18 : vector<8x1xf32> to vector<8x128xf32>
    %20 = arith.subf %5, %19 : vector<8x128xf32>
    %21 = math.exp %20 : vector<8x128xf32>
    %cst_10 = arith.constant 0.000000e+00 : f32
    %22 = vector.broadcast %cst_10 : f32 to vector<8x128xf32>
    %23 = arith.select %13, %21, %22 : vector<8x128xi1>, vector<8x128xf32>
    %cst_11 = arith.constant dense<0.000000e+00> : vector<8xf32>
    %24 = vector.multi_reduction <add>, %23, %cst_11 [1] : vector<8x128xf32> to vector<8xf32>
    %25 = vector.shape_cast %24 : vector<8xf32> to vector<8x1xf32>
    %26 = arith.subf %7, %18 : vector<8x1xf32>
    %27 = math.exp %26 : vector<8x1xf32>
    %c0_12 = arith.constant 0 : index
    %c0_13 = arith.constant 0 : index
    %28 = vector.load %arg8[%c0_12, %c0_13] : memref<8x1xf32, #tpu.memory_space<vmem>>, vector<8x1xf32>
    %29 = arith.mulf %27, %28 : vector<8x1xf32>
    %30 = arith.addf %29, %25 : vector<8x1xf32>
    %c0_14 = arith.constant 0 : index
    %c0_15 = arith.constant 0 : index
    %31 = vector.load %arg8[%c0_14, %c0_15] : memref<8x1xf32, #tpu.memory_space<vmem>>, vector<8x1xf32>
    tpu.vector_store %arg8[%c0_14, %c0_15], %30 {strides = array<i32>} : memref<8x1xf32, #tpu.memory_space<vmem>>, vector<8x1xf32>,
    %c0_16 = arith.constant 0 : index
    %c0_17 = arith.constant 0 : index
    %32 = vector.load %arg7[%c0_16, %c0_17] : memref<8x1xf32, #tpu.memory_space<vmem>>, vector<8x1xf32>
    tpu.vector_store %arg7[%c0_16, %c0_17], %18 {strides = array<i32>} : memref<8x1xf32, #tpu.memory_space<vmem>>, vector<8x1xf32>,
    %c0_i32_18 = arith.constant 0 : i32
    %33 = arith.cmpi eq, %arg1, %c0_i32_18 : i32
    %34 = arith.extui %33 : i1 to i32
    %c0_i32_19 = arith.constant 0 : i32
    %35 = arith.cmpi ne, %34, %c0_i32_19 : i32
    scf.if %35 {
      %c0_20 = arith.constant 0 : index
      %c0_21 = arith.constant 0 : index
      %36 = vector.load %arg7[%c0_20, %c0_21] : memref<8x1xf32, #tpu.memory_space<vmem>>, vector<8x1xf32>
      %c0_22 = arith.constant 0 : index
      %c0_23 = arith.constant 0 : index
      %37 = vector.load %arg8[%c0_22, %c0_23] : memref<8x1xf32, #tpu.memory_space<vmem>>, vector<8x1xf32>
      %38 = math.log %37 : vector<8x1xf32>
      %39 = arith.addf %36, %38 : vector<8x1xf32>
      %40 = vector.shape_cast %39 : vector<8x1xf32> to vector<8x1xf32>
      %41 = vector.broadcast %40 : vector<8x1xf32> to vector<8x128xf32>
      %c0_24 = arith.constant 0 : index
      %c0_25 = arith.constant 0 : index
      %42 = vector.load %arg5[%c0_24, %c0_25] : memref<8x128xf32, #tpu.memory_space<vmem>>, vector<8x128xf32>
      tpu.vector_store %arg5[%c0_24, %c0_25], %41 {strides = array<i32>} : memref<8x128xf32, #tpu.memory_space<vmem>>, vector<8x128xf32>,
    } else {
    }
    return
  }
  func.func @transform_0(%arg0: i32, %arg1: i32) -> (i32, i32) {
    %c0_i32 = arith.constant 0 : i32
    %c0_i32_0 = arith.constant 0 : i32
    return %arg0, %c0_i32 : i32, i32
  }
  func.func @transform_1(%arg0: i32, %arg1: i32) -> (i32, i32) {
    %c0_i32 = arith.constant 0 : i32
    %c0_i32_0 = arith.constant 0 : i32
    return %c0_i32, %arg1 : i32, i32
  }
  func.func @transform_2(%arg0: i32, %arg1: i32) -> (i32, i32) {
    %c0_i32 = arith.constant 0 : i32
    return %arg0, %arg1 : i32, i32
  }
  func.func @transform_3(%arg0: i32, %arg1: i32) -> (i32, i32) {
    %c0_i32 = arith.constant 0 : i32
    %c0_i32_0 = arith.constant 0 : i32
    return %arg0, %c0_i32 : i32, i32
  }
}

</mosaic_0001>

<llo_original>
// kernel: tpu_custom_call.1
$region0: #{tpu_custom_call.1}
  #allocation0 [shape = 'u32[]', space=smem, size = 0x4, offset = 0x4, fixed_abs, tag = 'smem constant byte address 0x4 - core index']
  #allocation1 [shape = 'u32[144,128]{1,0:T(1,128)}', space=vmem, size = 0x12000, scoped, tag = 'internal scratch']
  #allocation2 [shape = 'f32[8,128]{1,0:T(8,128)}', space=vmem, size = 0x1000, scoped, tag = 'scratch operand']
  #allocation3 [shape = 'f32[8,1]{1,0:T(8,128)}', space=vmem, size = 0x1000, scoped, tag = 'scratch operand']
  #allocation4 [shape = 'f32[8,1]{1,0:T(8,128)}', space=vmem, size = 0x1000, scoped, tag = 'scratch operand']
  %s0 = inlined_call_operand.hbm [shape: f32[8,128], index: 0, kind: input, shape index: {}]
  %s1 = inlined_call_operand.hbm [shape: f32[128,128], index: 1, kind: input, shape index: {}]
  %s2 = inlined_call_operand.hbm [shape: f32[8,128], index: 2, kind: output, shape index: {0}]
  %s3 = inlined_call_operand.hbm [shape: f32[8,128], index: 3, kind: output, shape index: {1}]
  %4 = xla_tuple %s2, %s3
  %s5 = sld [smem:[#allocation0]]
  $region42: #{tpu_custom_call.1} parent=0
    _
  %s7 = ssub.s32 1, %s5
  %s8 = scalar_select 0, %s7, %s5
  $region1: #{tpu_custom_call.1} parent=0
    #allocation5 [shape = 'u8[4096]{0}', space=vmem, size = 0x1000, scoped, tag = 'input window, operand 0, single buffered']
    #allocation6 [shape = 's32[1]{0}', space=sflag, size = 0x4, scoped, tag = 'scoped memory for tpu_custom_call.1']
    #allocation7 [shape = 's32[1]{0}', space=sflag, size = 0x4, scoped, tag = 'scoped memory for tpu_custom_call.1']
    #allocation8 [shape = 'u8[65536]{0}', space=vmem, size = 0x10000, scoped, tag = 'input window, operand 1, single buffered']
    #allocation9 [shape = 's32[1]{0}', space=sflag, size = 0x4, scoped, tag = 'scoped memory for tpu_custom_call.1']
    #allocation10 [shape = 'u8[4096]{0}', space=vmem, size = 0x1000, scoped, tag = 'output window, operand 0, single buffered']
    #allocation11 [shape = 'u8[4096]{0}', space=vmem, size = 0x1000, scoped, tag = 'output window, operand 1, single buffered']
    #allocation12 [shape = 's32[1]{0}', space=sflag, size = 0x4, scoped, tag = 'scoped memory for tpu_custom_call.1']
    %9 = vsyncpa [#allocation6], 0
    %10 = vsyncpa [#allocation9], 0
    %11 = vsyncpa [#allocation7], 0
    %12 = vsyncpa [#allocation12], 0
    // Predicated region
    $region2: #{tpu_custom_call.1} parent=1 // pred_check
      _
    $region3: #{tpu_custom_call.1} parent=1 // pred_check_branch
      %14 = sbr.rel (0) target = $region5
    $region4: #{tpu_custom_call.1} parent=1 // pred_region
      %s16 = ssub.s32 128, 128
      %17 = vsyncadd [#allocation6], %s16
      %s19 = sshll.u32 [#allocation5], 4
      %s20 = int_to_ptr.vmem [resolvable:$true] %s19
      %22 = dma.hbm_to_vmem [thread:$0]  %s0, 128, %s20, [#allocation6]
    $region5: #{tpu_custom_call.1} parent=1 // pred_fallthru
      _
    // Predicated region
    $region6: #{tpu_custom_call.1} parent=1 // pred_check
      _
    $region7: #{tpu_custom_call.1} parent=1 // pred_check_branch
      %24 = sbr.rel (0) target = $region9
    $region8: #{tpu_custom_call.1} parent=1 // pred_region
      %s26 = ssub.s32 2048, 2048
      %27 = vsyncadd [#allocation9], %s26
      %s28 = sshll.u32 [#allocation8], 4
      %s29 = int_to_ptr.vmem [resolvable:$true] %s28
      %34 = dma.hbm_to_vmem [thread:$0]  %s1, 2048, %s29, [#allocation9], 128, 128, 8
    $region9: #{tpu_custom_call.1} parent=1 // pred_fallthru
      _
    // Predicated region
    $region10: #{tpu_custom_call.1} parent=1 // pred_check
      _
    $region11: #{tpu_custom_call.1} parent=1 // pred_check_branch
      %36 = sbr.rel (0) target = $region13
    $region12: #{tpu_custom_call.1} parent=1 // pred_region
      %37 = dma.done [#allocation6], 128
    $region13: #{tpu_custom_call.1} parent=1 // pred_fallthru
      _
    // Predicated region
    $region14: #{tpu_custom_call.1} parent=1 // pred_check
      _
    $region15: #{tpu_custom_call.1} parent=1 // pred_check_branch
      %39 = sbr.rel (0) target = $region17
    $region16: #{tpu_custom_call.1} parent=1 // pred_region
      %40 = dma.done [#allocation9], 2048
    $region17: #{tpu_custom_call.1} parent=1 // pred_fallthru
      _
    %p41 = scmp.eq.s32.totalorder 0, 0
    // Predicated region
    $region18: #{tpu_custom_call.1} parent=1 // pred_check
      %p42 = pneg %p41
    $region19: #{tpu_custom_call.1} parent=1 // pred_check_branch
      %44 = sbr.rel (%p42) target = $region21
    $region20: #{tpu_custom_call.1} parent=1 // pred_region
      %v45 = vld [vmem:[#allocation5] sm:$0xff]
      %v46 = vmul.f32 %v45, 30.0
      %47 = vst [vmem:[#allocation2] sm:$0xff] %v46
      %vm48 = vcmask 7168
      %49 = vst.msk [vmem:[#allocation3] sm:$0xff] %vm48, -inf
      %50 = vst.msk [vmem:[#allocation4] sm:$0xff] %vm48, 0.0
    $region21: #{tpu_custom_call.1} parent=1 // pred_fallthru
      _
    %v51 = vld [vmem:[#allocation2] sm:$0xff]
    %v52 = vld [vmem:[#allocation8] sm:$0xff]
    %v53 = vld [vmem:[#allocation8 + $0x8] sm:$0xff]
    %v54 = vld [vmem:[#allocation8 + $0x10] sm:$0xff]
    %v55 = vld [vmem:[#allocation8 + $0x18] sm:$0xff]
    %v56 = vld [vmem:[#allocation8 + $0x20] sm:$0xff]
    %v57 = vld [vmem:[#allocation8 + $0x28] sm:$0xff]
    %v58 = vld [vmem:[#allocation8 + $0x30] sm:$0xff]
    %v59 = vld [vmem:[#allocation8 + $0x38] sm:$0xff]
    %v60 = vld [vmem:[#allocation8 + $0x40] sm:$0xff]
    %v61 = vld [vmem:[#allocation8 + $0x48] sm:$0xff]
    %v62 = vld [vmem:[#allocation8 + $0x50] sm:$0xff]
    %v63 = vld [vmem:[#allocation8 + $0x58] sm:$0xff]
    %v64 = vld [vmem:[#allocation8 + $0x60] sm:$0xff]
    %v65 = vld [vmem:[#allocation8 + $0x68] sm:$0xff]
    %v66 = vld [vmem:[#allocation8 + $0x70] sm:$0xff]
    %v67 = vld [vmem:[#allocation8 + $0x78] sm:$0xff]
    %68 = vmatprep.subr.mxu0 0.0
    %69 = vmatpush1.msra.mxu0 %v52
    %70 = vmatprep.subr.mxu0 0.0
    %71 = vmatpush1.msra.mxu0 %v53
    %72 = vmatprep.subr.mxu0 0.0
    %73 = vmatpush1.msra.mxu0 %v54
    %74 = vmatprep.subr.mxu0 0.0
    %75 = vmatpush1.msra.mxu0 %v55
    %76 = vmatprep.subr.mxu0 0.0
    %77 = vmatpush1.msra.mxu0 %v56
    %78 = vmatprep.subr.mxu0 0.0
    %79 = vmatpush1.msra.mxu0 %v57
    %80 = vmatprep.subr.mxu0 0.0
    %81 = vmatpush1.msra.mxu0 %v58
    %82 = vmatprep.subr.mxu0 0.0
    %83 = vmatpush1.msra.mxu0 %v59
    %84 = vmatprep.subr.mxu0 0.0
    %85 = vmatpush1.msra.mxu0 %v60
    %86 = vmatprep.subr.mxu0 0.0
    %87 = vmatpush1.msra.mxu0 %v61
    %88 = vmatprep.subr.mxu0 0.0
    %89 = vmatpush1.msra.mxu0 %v62
    %90 = vmatprep.subr.mxu0 0.0
    %91 = vmatpush1.msra.mxu0 %v63
    %92 = vmatprep.subr.mxu0 0.0
    %93 = vmatpush1.msra.mxu0 %v64
    %94 = vmatprep.subr.mxu0 0.0
    %95 = vmatpush1.msra.mxu0 %v65
    %96 = vmatprep.subr.mxu0 0.0
    %97 = vmatpush1.msra.mxu0 %v66
    %98 = vmatprep.subr.mxu0 0.0
    %99 = vmatpush1.msra.mxu0 %v67
    %100 = vmatprep.subr.mxu0 0.0
    %101 = vmatpush1.msra.mxu0 0.0
    %102 = vmatprep.subr.mxu0 0.0
    %103 = vmatpush1.msra.mxu0 0.0
    %104 = vmatprep.subr.mxu0 0.0
    %105 = vmatpush1.msra.mxu0 0.0
    %106 = vmatprep.subr.mxu0 0.0
    %107 = vmatpush1.msra.mxu0 0.0
    %108 = vmatprep.subr.mxu0 0.0
    %109 = vmatpush1.msra.mxu0 0.0
    %110 = vmatprep.subr.mxu0 0.0
    %111 = vmatpush1.msra.mxu0 0.0
    %112 = vmatprep.subr.mxu0 0.0
    %113 = vmatpush1.msra.mxu0 0.0
    %114 = vmatprep.subr.mxu0 0.0
    %115 = vmatpush1.msra.mxu0 0.0
    %116 = vmatprep.subr.mxu0 0.0
    %117 = vmatpush1.msra.mxu0 0.0
    %118 = vmatprep.subr.mxu0 0.0
    %119 = vmatpush1.msra.mxu0 0.0
    %120 = vmatprep.subr.mxu0 0.0
    %121 = vmatpush1.msra.mxu0 0.0
    %122 = vmatprep.subr.mxu0 0.0
    %123 = vmatpush1.msra.mxu0 0.0
    %124 = vmatprep.subr.mxu0 0.0
    %125 = vmatpush1.msra.mxu0 0.0
    %126 = vmatprep.subr.mxu0 0.0
    %127 = vmatpush1.msra.mxu0 0.0
    %128 = vmatprep.subr.mxu0 0.0
    %129 = vmatpush1.msra.mxu0 0.0
    %130 = vmatprep.subr.mxu0 0.0
    %131 = vmatpush1.msra.mxu0 0.0
    %132 = vmatprep.mubr.f32.mxu0 0.0
    %133 = vmatmul.mubr.f32.gmra.mrb[0].mxu0 %v51
    %v134 = vpop.f32.mrb[0].mxu0
    %v135 = vadd.f32 0.0, %v134
    %v136 = vpop.f32.mrb[0].mxu0
    %137 = vdwg.mxu0
    %138 = vst [vmem:[#allocation10] sm:$0xff] %v135
    %v139 = vld [vmem:[#allocation3] sm:$0xff]
    %v140 = vlaneseq
    %v141 = vand.u32 %v140, 127
    %s142 = smul.u32 0, 128
    %v143 = vstv %s142
    %v144 = vadd.s32 %v141, %v143
    %vm145 = vcmp.lt.s32.totalorder %v144, 16
    %v146 = vsel %vm145, %v135, -inf
    %147 = vmax.xlane.f32.xlu0 %v146
    %v148 = vpop.xlane.xlu0 %147
    %v149 = vmax.f32 %v139, %v148
    %151 = vset.pattern.permute.xlu0 0
    %152 = vperm.xlu0 %151, %v149
    %v153 = vpop.permute.xlu0 %152
    %v155 = vsub.f32 %v135, %v153
    %v156 = vmul.f32 %v155, 1.442695
    %v157 = vpow.pop %v156
    %v158 = vsel %vm145, %v157, 0.0
    %159 = vadd.xlane.f32.xlu0 %v158
    %v160 = vpop.xlane.xlu0 %159
    %v161 = vsub.f32 %v139, %v149
    %v162 = vmul.f32 %v161, 1.442695
    %v163 = vpow.pop %v162
    %v164 = vld [vmem:[#allocation4] sm:$0xff]
    %v165 = vmul.f32 %v163, %v164
    %v166 = vadd.f32 %v165, %v160
    %vm167 = vcmask 7168
    %168 = vst.msk [vmem:[#allocation4] sm:$0xff] %vm167, %v166
    %169 = vst.msk [vmem:[#allocation3] sm:$0xff] %vm167, %v149
    // Predicated region
    $region22: #{tpu_custom_call.1} parent=1 // pred_check
      %p170 = pneg %p41
    $region23: #{tpu_custom_call.1} parent=1 // pred_check_branch
      %172 = sbr.rel (%p170) target = $region25
    $region24: #{tpu_custom_call.1} parent=1 // pred_region
      %v173 = vld [vmem:[#allocation3] sm:$0xff]
      %v174 = vld [vmem:[#allocation4] sm:$0xff]
      %v175 = vlog2.pop %v174
      %v176 = vmul.f32 %v175, 0.6931472
      %v177 = vadd.f32 %v173, %v176
      %179 = vset.pattern.permute.xlu0 0
      %180 = vperm.xlu0 %179, %v177
      %v181 = vpop.permute.xlu0 %180
      %183 = vst [vmem:[#allocation11] sm:$0xff] %v181
    $region25: #{tpu_custom_call.1} parent=1 // pred_fallthru
      _
    // Predicated region
    $region26: #{tpu_custom_call.1} parent=1 // pred_check
      _
    $region27: #{tpu_custom_call.1} parent=1 // pred_check_branch
      %185 = sbr.rel (0) target = $region29
    $region28: #{tpu_custom_call.1} parent=1 // pred_region
      %s187 = ssub.s32 128, 128
      %188 = vsyncadd [#allocation7], %s187
      %s190 = sshll.u32 [#allocation10], 4
      %s191 = int_to_ptr.vmem [resolvable:$true] %s190
      %193 = dma.vmem_to_hbm [thread:$0]  %s191, 128, %s2, [#allocation7]
    $region29: #{tpu_custom_call.1} parent=1 // pred_fallthru
      _
    // Predicated region
    $region30: #{tpu_custom_call.1} parent=1 // pred_check
      _
    $region31: #{tpu_custom_call.1} parent=1 // pred_check_branch
      %195 = sbr.rel (0) target = $region33
    $region32: #{tpu_custom_call.1} parent=1 // pred_region
      %s197 = ssub.s32 128, 128
      %198 = vsyncadd [#allocation12], %s197
      %s200 = sshll.u32 [#allocation11], 4
      %s201 = int_to_ptr.vmem [resolvable:$true] %s200
      %203 = dma.vmem_to_hbm [thread:$0]  %s201, 128, %s3, [#allocation12]
    $region33: #{tpu_custom_call.1} parent=1 // pred_fallthru
      _
    // Predicated region
    $region34: #{tpu_custom_call.1} parent=1 // pred_check
      _
    $region35: #{tpu_custom_call.1} parent=1 // pred_check_branch
      %205 = sbr.rel (0) target = $region37
    $region36: #{tpu_custom_call.1} parent=1 // pred_region
      %206 = dma.done [#allocation7], 128
    $region37: #{tpu_custom_call.1} parent=1 // pred_fallthru
      _
    // Predicated region
    $region38: #{tpu_custom_call.1} parent=1 // pred_check
      _
    $region39: #{tpu_custom_call.1} parent=1 // pred_check_branch
      %208 = sbr.rel (0) target = $region41
    $region40: #{tpu_custom_call.1} parent=1 // pred_region
      %209 = dma.done [#allocation12], 128
    $region41: #{tpu_custom_call.1} parent=1 // pred_fallthru
      _
    %210 = vsyncpa [#allocation6], 1
    %211 = vsyncpa [#allocation9], 1
    %212 = vsyncpa [#allocation7], 1
    %213 = vsyncpa [#allocation12], 1

</llo_original>
